<compile_context>
chip_gen: v6e
topology: v6e:2x2x1
jax: 0.10.0
libtpu: 0.0.40
codegen_flags: <defaults>
</compile_context>

<pallas_src>
import math
import jax
import jax.numpy as jnp
from jax.experimental import pallas as pl
from jax.experimental.pallas import tpu as pltpu


ALPHA = 0.2  # LeakyReLU negative slope


# ---------------------------------------------------------------------------
# Kernels
# ---------------------------------------------------------------------------

def _support_kernel(feat_ref, w_ref, s_ref):
    # S = relu(feature @ W) for one row tile.
    s = jnp.dot(feat_ref[...], w_ref[...], preferred_element_type=jnp.float32)
    s_ref[...] = jnp.maximum(s, 0.0)


def _propagate_kernel(adj_ref, x_ref, y_ref):
    # Y[tile] = adj[tile, :] @ X   (X resident whole in VMEM, [N, E] is small)
    y_ref[...] = jnp.dot(adj_ref[...], x_ref[...],
                         preferred_element_type=jnp.float32)


def _final_kernel(adj_ref, as_full_ref, s_tile_ref, as_tile_ref,
                  wlo_ref, wmid_ref, bcat_ref, bias_ref, out_ref):
    s_t = s_tile_ref[...]                     # [TM, E]  support row tile
    as_t = as_tile_ref[...]                   # [TM, E]  (adj @ S) row tile

    # low-pass: (adj + I) @ S  ==  adj@S + S
    out_low = as_t + s_t

    # mid-pass: (adj@adj - I) @ S  ==  adj @ (adj@S) - S
    aas_t = jnp.dot(adj_ref[...], as_full_ref[...],
                    preferred_element_type=jnp.float32)
    out_mid = aas_t - s_t

    # nn_cat Linear(2E -> E) applied without concatenation:
    #   cat([low, mid]) @ W_cat.T == low @ W_cat[:, :E].T + mid @ W_cat[:, E:].T
    lin = (jnp.dot(out_low, wlo_ref[...], preferred_element_type=jnp.float32)
           + jnp.dot(out_mid, wmid_ref[...], preferred_element_type=jnp.float32)
           + bcat_ref[...])

    # LeakyReLU(alpha) + module bias
    out = jnp.where(lin > 0, lin, ALPHA * lin)
    out_ref[...] = out + bias_ref[...]


# ---------------------------------------------------------------------------
# Wrapper
# ---------------------------------------------------------------------------

def gcn_mid_attention(feature, adj, weight, bias, wcat, bcat, *, row_tile=256):
    """Pallas forward of Item_GraphConvolution_mid_attention.

    feature: [N, F] f32
    adj:     [N, N] f32 (dense adjacency)
    weight:  [F, E] f32
    bias:    [E]    f32
    wcat:    [E, 2E] f32   (nn_cat.weight, PyTorch out x in convention)
    bcat:    [E]    f32    (nn_cat.bias)
    returns: [N, E] f32
    """
    N, F = feature.shape
    E = weight.shape[1]

    # Row tile: largest of (row_tile, N); multiple of 8 or equal to full dim.
    TM = min(N, row_tile)
    grid = (pl.cdiv(N, TM),)

    # Pre-split / pre-transpose the Linear weight so the kernel does two
    # plain matmuls instead of a concat + transpose.
    wcat_lo = jnp.transpose(wcat[:, :E])    # [E, E]
    wcat_mid = jnp.transpose(wcat[:, E:])   # [E, E]
    bcat2 = bcat.reshape(1, E)
    bias2 = bias.reshape(1, E)

    tiled = lambda shape: pl.BlockSpec(shape, lambda i: (i, 0))
    whole = lambda shape: pl.BlockSpec(shape, lambda i: (0, 0))

    parallel = pltpu.CompilerParams(dimension_semantics=("parallel",))

    # --- Call 1: S = relu(feature @ W) ------------------------------------
    support = pl.pallas_call(
        _support_kernel,
        out_shape=jax.ShapeDtypeStruct((N, E), jnp.float32),
        grid=grid,
        in_specs=[tiled((TM, F)),            # feature row slab
                  whole((F, E))],            # weight (resident)
        out_specs=tiled((TM, E)),
        compiler_params=parallel,
        cost_estimate=pl.CostEstimate(
            flops=2 * N * F * E, transcendentals=0,
            bytes_accessed=4 * (N * F + F * E + N * E)),
    )(feature, weight)

    # --- Call 2: AS = adj @ S ----------------------------------------------
    adj_support = pl.pallas_call(
        _propagate_kernel,
        out_shape=jax.ShapeDtypeStruct((N, E), jnp.float32),
        grid=grid,
        in_specs=[tiled((TM, N)),            # adj row slab (streamed)
                  whole((N, E))],            # S (resident)
        out_specs=tiled((TM, E)),
        compiler_params=parallel,
        cost_estimate=pl.CostEstimate(
            flops=2 * N * N * E, transcendentals=0,
            bytes_accessed=4 * (N * N + 2 * N * E)),
    )(adj, support)

    # --- Call 3: fused low/mid + linear + leaky_relu + bias -----------------
    out = pl.pallas_call(
        _final_kernel,
        out_shape=jax.ShapeDtypeStruct((N, E), jnp.float32),
        grid=grid,
        in_specs=[tiled((TM, N)),            # adj row slab (streamed)
                  whole((N, E)),             # AS (resident)
                  tiled((TM, E)),            # S row tile
                  tiled((TM, E)),            # AS row tile
                  whole((E, E)),             # wcat_lo^T
                  whole((E, E)),             # wcat_mid^T
                  whole((1, E)),             # bcat
                  whole((1, E))],            # bias
        out_specs=tiled((TM, E)),
        compiler_params=parallel,
        cost_estimate=pl.CostEstimate(
            flops=2 * N * N * E + 4 * N * E * E, transcendentals=0,
            bytes_accessed=4 * (N * N + 4 * N * E + 2 * E * E + 2 * E)),
    )(adj, adj_support, support, adj_support, wcat_lo, wcat_mid, bcat2, bias2)

    return out


# ---------------------------------------------------------------------------
# Reference + test
# ---------------------------------------------------------------------------

def _reference(feature, adj, weight, bias, wcat, bcat):
    support = jax.nn.relu(feature @ weight)
    n = adj.shape[0]
    eye = jnp.eye(n, dtype=jnp.float32)
    out_low = (adj + eye) @ support
    out_mid = (adj @ adj - eye) @ support
    cat = jnp.concatenate([out_low, out_mid], axis=1)
    lin = cat @ wcat.T + bcat
    out = jnp.where(lin > 0, lin, ALPHA * lin)
    return out + bias


if __name__ == "__main__":
    # Small shapes consistent with the module: N nodes, F feature dim, E embed dim.
    N, F, E = 8, 16, 32

    key = jax.random.PRNGKey(0)
    kf, ka, kw, kb, kcw, kcb = jax.random.split(key, 6)

    feature = jax.random.normal(kf, (N, F), dtype=jnp.float32)
    # binary dense "adjacency"
    adj = (jax.random.uniform(ka, (N, N), dtype=jnp.float32) < 0.3).astype(jnp.float32)

    # Deterministic parameter init mirroring reset_parameters():
    stdv = 1.0 / math.sqrt(E)
    weight = jax.random.uniform(kw, (F, E), minval=-stdv, maxval=stdv, dtype=jnp.float32)
    bias = jax.random.uniform(kb, (E,), minval=-stdv, maxval=stdv, dtype=jnp.float32)

    # nn.Linear(2E, E) init: uniform(-1/sqrt(fan_in), 1/sqrt(fan_in))
    bound = 1.0 / math.sqrt(2 * E)
    wcat = jax.random.uniform(kcw, (E, 2 * E), minval=-bound, maxval=bound, dtype=jnp.float32)
    bcat = jax.random.uniform(kcb, (E,), minval=-bound, maxval=bound, dtype=jnp.float32)

    out = gcn_mid_attention(feature, adj, weight, bias, wcat, bcat)
    out = jax.block_until_ready(out)

    ref = _reference(feature, adj, weight, bias, wcat, bcat)
    assert out.shape == (N, E)
    assert jnp.allclose(out, ref, atol=1e-4, rtol=1e-4), "mismatch vs reference"

    print("KERNEL_OK")
</pallas_src>

<mosaic_0001>
module attributes {stable_mosaic.version = 11 : i64} {
  func.func @_support_kernel(%arg0: i32, %arg1: memref<8x16xf32, #tpu.memory_space<vmem>>, %arg2: memref<16x32xf32, #tpu.memory_space<vmem>>, %arg3: memref<8x32xf32, #tpu.memory_space<vmem>>) attributes {dimension_semantics = [#tpu.dimension_semantics<parallel>], iteration_bounds = array<i64: 1>, scalar_prefetch = 0 : i64, scratch_operands = 0 : i64, tpu.core_type = #tpu.core_type<tc>, window_params = [{transform_indices = @transform_0, window_bounds = array<i64: 8, 16>}, {pipeline_mode = #tpu.pipeline_mode<synchronous>, transform_indices = @transform_1, window_bounds = array<i64: 16, 32>}, {transform_indices = @transform_2, window_bounds = array<i64: 8, 32>}]} {
    %c0 = arith.constant 0 : index
    %c0_0 = arith.constant 0 : index
    %0 = vector.load %arg1[%c0, %c0_0] : memref<8x16xf32, #tpu.memory_space<vmem>>, vector<8x16xf32>
    %c0_1 = arith.constant 0 : index
    %c0_2 = arith.constant 0 : index
    %1 = vector.load %arg2[%c0_1, %c0_2] : memref<16x32xf32, #tpu.memory_space<vmem>>, vector<16x32xf32>
    %cst = arith.constant dense<0.000000e+00> : vector<8x32xf32>
    %2 = tpu.matmul %0, %1, %cst {dimension_numbers = #tpu.dot_dimension_numbers<[1], [0], [0], [1], [0, 0, 1, 1], [], []>} : vector<8x16xf32>, vector<16x32xf32>, vector<8x32xf32> -> vector<8x32xf32>
    %cst_3 = arith.constant 0.000000e+00 : f32
    %3 = vector.broadcast %cst_3 : f32 to vector<8x32xf32>
    %4 = arith.maximumf %2, %3 : vector<8x32xf32>
    %c0_4 = arith.constant 0 : index
    %c0_5 = arith.constant 0 : index
    %5 = vector.load %arg3[%c0_4, %c0_5] : memref<8x32xf32, #tpu.memory_space<vmem>>, vector<8x32xf32>
    tpu.vector_store %arg3[%c0_4, %c0_5], %4 {strides = array<i32>} : memref<8x32xf32, #tpu.memory_space<vmem>>, vector<8x32xf32>,
    return
  }
  func.func @transform_0(%arg0: i32) -> (i32, i32) {
    %c0_i32 = arith.constant 0 : i32
    %c0_i32_0 = arith.constant 0 : i32
    return %arg0, %c0_i32 : i32, i32
  }
  func.func @transform_1(%arg0: i32) -> (i32, i32) {
    %c0_i32 = arith.constant 0 : i32
    %c0_i32_0 = arith.constant 0 : i32
    %c0_i32_1 = arith.constant 0 : i32
    return %c0_i32, %c0_i32_0 : i32, i32
  }
  func.func @transform_2(%arg0: i32) -> (i32, i32) {
    %c0_i32 = arith.constant 0 : i32
    %c0_i32_0 = arith.constant 0 : i32
    return %arg0, %c0_i32 : i32, i32
  }
}

</mosaic_0001>

<llo_original>
// kernel: tpu_custom_call.1
$region0: #{tpu_custom_call.1}
  #allocation0 [shape = 'u32[]', space=smem, size = 0x4, offset = 0x4, fixed_abs, tag = 'smem constant byte address 0x4 - core index']
  #allocation1 [shape = 'u32[144,128]{1,0:T(1,128)}', space=vmem, size = 0x12000, scoped, tag = 'internal scratch']
  %s0 = inlined_call_operand.hbm [shape: f32[8,16], index: 0, kind: input, shape index: {}]
  %s1 = inlined_call_operand.hbm [shape: f32[16,32], index: 1, kind: input, shape index: {}]
  %s2 = inlined_call_operand.hbm [shape: f32[8,32], index: 2, kind: output, shape index: {}]
  %s3 = sld [smem:[#allocation0]]
  $region26: #{tpu_custom_call.1} parent=0
    _
  %s5 = ssub.s32 1, %s3
  %s6 = scalar_select 0, %s5, %s3
  $region1: #{tpu_custom_call.1} parent=0
    #allocation2 [shape = 'u8[4096]{0}', space=vmem, size = 0x1000, scoped, tag = 'input window, operand 0, single buffered']
    #allocation3 [shape = 's32[1]{0}', space=sflag, size = 0x4, scoped, tag = 'scoped memory for tpu_custom_call.1']
    #allocation4 [shape = 's32[1]{0}', space=sflag, size = 0x4, scoped, tag = 'scoped memory for tpu_custom_call.1']
    #allocation5 [shape = 'u8[8192]{0}', space=vmem, size = 0x2000, scoped, tag = 'input window, operand 1, single buffered']
    #allocation6 [shape = 's32[1]{0}', space=sflag, size = 0x4, scoped, tag = 'scoped memory for tpu_custom_call.1']
    #allocation7 [shape = 'u8[4096]{0}', space=vmem, size = 0x1000, scoped, tag = 'output window, operand 0, single buffered']
    %7 = vsyncpa [#allocation3], 0
    %8 = vsyncpa [#allocation6], 0
    %9 = vsyncpa [#allocation4], 0
    // Predicated region
    $region2: #{tpu_custom_call.1} parent=1 // pred_check
      _
    $region3: #{tpu_custom_call.1} parent=1 // pred_check_branch
      %11 = sbr.rel (0) target = $region5
    $region4: #{tpu_custom_call.1} parent=1 // pred_region
      %s13 = ssub.s32 128, 128
      %14 = vsyncadd [#allocation3], %s13
      %s16 = sshll.u32 [#allocation2], 4
      %s17 = int_to_ptr.vmem [resolvable:$true] %s16
      %19 = dma.hbm_to_vmem [thread:$0]  %s0, 128, %s17, [#allocation3]
    $region5: #{tpu_custom_call.1} parent=1 // pred_fallthru
      _
    // Predicated region
    $region6: #{tpu_custom_call.1} parent=1 // pred_check
      _
    $region7: #{tpu_custom_call.1} parent=1 // pred_check_branch
      %21 = sbr.rel (0) target = $region9
    $region8: #{tpu_custom_call.1} parent=1 // pred_region
      %s23 = ssub.s32 256, 256
      %24 = vsyncadd [#allocation6], %s23
      %s25 = sshll.u32 [#allocation5], 4
      %s26 = int_to_ptr.vmem [resolvable:$true] %s25
      %31 = dma.hbm_to_vmem [thread:$0]  %s1, 256, %s26, [#allocation6], 128, 128, 8
    $region9: #{tpu_custom_call.1} parent=1 // pred_fallthru
      _
    // Predicated region
    $region10: #{tpu_custom_call.1} parent=1 // pred_check
      _
    $region11: #{tpu_custom_call.1} parent=1 // pred_check_branch
      %33 = sbr.rel (0) target = $region13
    $region12: #{tpu_custom_call.1} parent=1 // pred_region
      %34 = dma.done [#allocation3], 128
    $region13: #{tpu_custom_call.1} parent=1 // pred_fallthru
      _
    // Predicated region
    $region14: #{tpu_custom_call.1} parent=1 // pred_check
      _
    $region15: #{tpu_custom_call.1} parent=1 // pred_check_branch
      %36 = sbr.rel (0) target = $region17
    $region16: #{tpu_custom_call.1} parent=1 // pred_region
      %37 = dma.done [#allocation6], 256
    $region17: #{tpu_custom_call.1} parent=1 // pred_fallthru
      _
    %v38 = vld [vmem:[#allocation2] sm:$0xff]
    %v39 = vld [vmem:[#allocation5] sm:$0xff]
    %v40 = vld [vmem:[#allocation5 + $0x8] sm:$0xff]
    %vm41 = vcmask 130048
    %v43 = vsel %vm41, %v38, 0
    %45 = vmatprep.subr.mxu0 0.0
    %46 = vmatpush1.msra.mxu0 0.0
    %47 = vmatprep.subr.mxu0 0.0
    %48 = vmatpush1.msra.mxu0 0.0
    %49 = vmatprep.subr.mxu0 0.0
    %50 = vmatpush1.msra.mxu0 0.0
    %51 = vmatprep.subr.mxu0 0.0
    %52 = vmatpush1.msra.mxu0 0.0
    %53 = vmatprep.subr.mxu0 0.0
    %54 = vmatpush1.msra.mxu0 0.0
    %55 = vmatprep.subr.mxu0 0.0
    %56 = vmatpush1.msra.mxu0 0.0
    %57 = vmatprep.subr.mxu0 0.0
    %58 = vmatpush1.msra.mxu0 0.0
    %59 = vmatprep.subr.mxu0 0.0
    %60 = vmatpush1.msra.mxu0 0.0
    %61 = vmatprep.subr.mxu0 0.0
    %62 = vmatpush1.msra.mxu0 0.0
    %63 = vmatprep.subr.mxu0 0.0
    %64 = vmatpush1.msra.mxu0 0.0
    %65 = vmatprep.subr.mxu0 0.0
    %66 = vmatpush1.msra.mxu0 0.0
    %67 = vmatprep.subr.mxu0 0.0
    %68 = vmatpush1.msra.mxu0 0.0
    %69 = vmatprep.subr.mxu0 0.0
    %70 = vmatpush1.msra.mxu0 0.0
    %71 = vmatprep.subr.mxu0 0.0
    %72 = vmatpush1.msra.mxu0 0.0
    %73 = vmatprep.subr.mxu0 0.0
    %74 = vmatpush1.msra.mxu0 %v40
    %75 = vmatprep.subr.mxu0 0.0
    %76 = vmatpush1.msra.mxu0 %v39
    %77 = vmatprep.subr.mxu0 0.0
    %78 = vmatpush2.msra.mxu0 0.0
    %79 = vmatprep.subr.mxu0 0.0
    %80 = vmatpush2.msra.mxu0 0.0
    %81 = vmatprep.subr.mxu0 0.0
    %82 = vmatpush2.msra.mxu0 0.0
    %83 = vmatprep.subr.mxu0 0.0
    %84 = vmatpush2.msra.mxu0 0.0
    %85 = vmatprep.subr.mxu0 0.0
    %86 = vmatpush2.msra.mxu0 0.0
    %87 = vmatprep.subr.mxu0 0.0
    %88 = vmatpush2.msra.mxu0 0.0
    %89 = vmatprep.subr.mxu0 0.0
    %90 = vmatpush2.msra.mxu0 0.0
    %91 = vmatprep.subr.mxu0 0.0
    %92 = vmatpush2.msra.mxu0 0.0
    %93 = vmatprep.subr.mxu0 0.0
    %94 = vmatpush2.msra.mxu0 0.0
    %95 = vmatprep.subr.mxu0 0.0
    %96 = vmatpush2.msra.mxu0 0.0
    %97 = vmatprep.subr.mxu0 0.0
    %98 = vmatpush2.msra.mxu0 0.0
    %99 = vmatprep.subr.mxu0 0.0
    %100 = vmatpush2.msra.mxu0 0.0
    %101 = vmatprep.subr.mxu0 0.0
    %102 = vmatpush2.msra.mxu0 0.0
    %103 = vmatprep.subr.mxu0 0.0
    %104 = vmatpush2.msra.mxu0 0.0
    %105 = vmatprep.subr.mxu0 0.0
    %106 = vmatpush2.msra.mxu0 0.0
    %107 = vmatprep.subr.mxu0 0.0
    %108 = vmatpush2.msra.mxu0 0.0
    %109 = vmatprep.mubr.f32.mxu0 0.0
    %110 = vmatmul.mubr.f32.gmra.mxu0 %v43
    %v111 = vpop.f32.mrf.mxu0
    %v112 = vadd.f32 0.0, %v111
    %v113 = vpop.f32.mrf.mxu0
    %114 = vdwg.mxu0
    %v115 = vmax.f32 %v112, 0.0
    %vm116 = vcmask 261120
    %117 = vst.msk [vmem:[#allocation7] sm:$0xff] %vm116, %v115
    // Predicated region
    $region18: #{tpu_custom_call.1} parent=1 // pred_check
      _
    $region19: #{tpu_custom_call.1} parent=1 // pred_check_branch
      %119 = sbr.rel (0) target = $region21
    $region20: #{tpu_custom_call.1} parent=1 // pred_region
      %s121 = ssub.s32 128, 128
      %122 = vsyncadd [#allocation4], %s121
      %s124 = sshll.u32 [#allocation7], 4
      %s125 = int_to_ptr.vmem [resolvable:$true] %s124
      %127 = dma.vmem_to_hbm [thread:$0]  %s125, 128, %s2, [#allocation4]
    $region21: #{tpu_custom_call.1} parent=1 // pred_fallthru
      _
    // Predicated region
    $region22: #{tpu_custom_call.1} parent=1 // pred_check
      _
    $region23: #{tpu_custom_call.1} parent=1 // pred_check_branch
      %129 = sbr.rel (0) target = $region25
    $region24: #{tpu_custom_call.1} parent=1 // pred_region
      %130 = dma.done [#allocation4], 128
    $region25: #{tpu_custom_call.1} parent=1 // pred_fallthru
      _
    %131 = vsyncpa [#allocation3], 1
    %132 = vsyncpa [#allocation6], 1
    %133 = vsyncpa [#allocation4], 1

</llo_original>
